<compile_context>
chip_gen: v6e
topology: v6e:2x2x1
jax: 0.10.0
libtpu: 0.0.40
codegen_flags: <defaults>
</compile_context>

<pallas_src>
import jax
import jax.numpy as jnp
import numpy as np
from jax.experimental import pallas as pl
from jax.experimental.pallas import tpu as pltpu


# ----------------------------- helpers ------------------------------------- #

def _cdiv(a, b):
    return (a + b - 1) // b


def _round_up(a, m):
    return _cdiv(a, m) * m


def _tpu_params():
    """(vmem_capacity_bytes, has_two_tensorcores) with safe fallbacks."""
    vmem_cap = 64 << 20                      # conservative default (v7x per-TC VMEM)
    try:
        vmem_cap = int(pltpu.get_tpu_info().vmem_capacity_bytes)
    except Exception:
        pass
    two_tc = vmem_cap <= (64 << 20)          # 64 MiB VMEM is the v7x (2-TC) signature
    try:
        kind = jax.devices()[0].device_kind.lower()
        two_tc = "v7" in kind
    except Exception:
        pass
    return vmem_cap, two_tc


def _choose_tm(hw, batch, per_tm_bytes, budget_bytes, two_tc, max_tm=8192):
    """Pixel (lane) tile: as large as the VMEM budget allows (128-aligned),
    then adjusted so 2-TC chips get an even (>=2) number of parallel blocks."""
    cap = max(128, (min(max_tm, budget_bytes // max(per_tm_bytes, 1)) // 128) * 128)
    tm = hw if hw <= cap else cap
    if two_tc and hw > 128:
        n = _cdiv(hw, tm)
        if (batch * n) % 2 == 1:             # includes the single-block (B=1) case
            tm = max(128, _round_up(_cdiv(hw, n + 1), 128))
    return tm


def _choose_tcin(cin, per_cin_bytes, fixed_bytes, budget_bytes):
    """Cin reduction tile for the K>1 kernel: full Cin if it fits, otherwise the
    largest power-of-two multiple of 128 dividing Cin that fits (best effort)."""
    if fixed_bytes + cin * per_cin_bytes <= budget_bytes or cin % 128 != 0:
        return cin
    t = 128
    while (t * 2 <= cin and cin % (t * 2) == 0
           and fixed_bytes + (t * 2) * per_cin_bytes <= budget_bytes):
        t *= 2
    return t


# ----------------------------- kernels ------------------------------------- #

def _conv1x1_kernel(x_ref, w_ref, b_ref, o_ref):
    """Pointwise conv tile: o = W @ x + b.  Scratch-free (no accumulator).

    x_ref: (1, Cin, TM)  pixels on lanes, original dtype (cast to bf16 on VPU)
    w_ref: (Cout, Cin)
    b_ref: (Cout, 1) f32
    o_ref: (1, Cout, TM) lane-dense output
    """
    x = x_ref[0].astype(jnp.bfloat16)
    w = w_ref[...].astype(jnp.bfloat16)
    acc = jnp.dot(w, x, preferred_element_type=jnp.float32)
    o_ref[0] = (acc + b_ref[...]).astype(o_ref.dtype)


def _make_kxk_kernel(K, Wp, HWq):
    """K>1 kernel: K*K taps are static lane-offset slices of the in-VMEM padded
    slab; accumulation in f32 scratch across the Cin-tile (reduction) grid axis."""

    def kernel(x_ref, w_ref, b_ref, o_ref, acc_ref):
        # x_ref:  (1, tcin, Lpad) bf16, padded image flattened with row stride Wp
        # w_ref:  (K*K, Cout, tcin);  b_ref: (Cout, 1) f32
        # o_ref:  (1, Cout, HWq);     acc_ref: (Cout, HWq) f32 scratch
        c = pl.program_id(1)

        @pl.when(c == 0)
        def _init():
            acc_ref[...] = jnp.zeros_like(acc_ref)

        xb = x_ref[0]                                    # (tcin, Lpad) bf16
        for kh in range(K):
            for kw in range(K):
                off = kh * Wp + kw                       # static lane offset of tap
                acc_ref[...] += jnp.dot(
                    w_ref[kh * K + kw].astype(jnp.bfloat16),
                    xb[:, off:off + HWq],
                    preferred_element_type=jnp.float32)

        @pl.when(c == pl.num_programs(1) - 1)
        def _finalize():
            o_ref[0] = (acc_ref[...] + b_ref[...]).astype(o_ref.dtype)

    return kernel


# ----------------------------- wrapper ------------------------------------- #

def my_conv2d(x, weight, bias, *, kernel_size=1):
    """Forward of myConv2d: Conv2d(Cin, Cout, K, padding=(K-1)//2).

    x: (B, Cin, H, W) NCHW (as in PyTorch); weight: (Cout, Cin, K, K); bias: (Cout,)
    returns (B, Cout, H, W)
    """
    B, Cin, H, W = x.shape
    Cout = weight.shape[0]
    K = kernel_size
    assert K % 2 == 1, "padding=(K-1)//2 is a 'same' conv only for odd kernel_size"

    vmem_cap, two_tc = _tpu_params()
    vmem_limit = (vmem_cap * 3) // 4            # ~96 MiB on v5e/v6e, ~48 MiB on v7x
    budget = vmem_limit // 2                    # headroom for compiler temporaries
    b_col = bias.astype(jnp.float32).reshape(Cout, 1)
    in_b = x.dtype.itemsize
    out_b = x.dtype.itemsize

    if K == 1:
        # Pointwise conv: NCHW -> (B, Cin, H*W) is a free reshape; no wrapper cast.
        HW = H * W
        xf = x.reshape(B, Cin, HW)
        per_tm = Cin * (2 * in_b + 2) + Cout * (2 * out_b + 4)   # dbl-buf in/out + temps
        tm = _choose_tm(HW, B, per_tm, budget, two_tc)
        grid = (B, _cdiv(HW, tm))
        out = pl.pallas_call(
            _conv1x1_kernel,
            out_shape=jax.ShapeDtypeStruct((B, Cout, HW), x.dtype),
            grid_spec=pltpu.PrefetchScalarGridSpec(
                num_scalar_prefetch=0,
                grid=grid,
                in_specs=[
                    pl.BlockSpec((1, Cin, tm), lambda b, m: (b, 0, m)),
                    pl.BlockSpec((Cout, Cin), lambda b, m: (0, 0)),
                    pl.BlockSpec((Cout, 1), lambda b, m: (0, 0)),
                ],
                out_specs=pl.BlockSpec((1, Cout, tm), lambda b, m: (b, 0, m)),
            ),
            compiler_params=pltpu.CompilerParams(
                dimension_semantics=("parallel", "parallel"),
                vmem_limit_bytes=vmem_limit,
            ),
        )(xf, weight.reshape(Cout, Cin), b_col)
        return out.reshape(B, Cout, H, W)

    # ---- K > 1: pad once, flatten with row stride Wp, taps as lane offsets ----
    p = (K - 1) // 2
    Wp = W + 2 * p
    Hp = H + 2 * p + 1          # one extra zero row so every tap window stays in range
    Lpad = Hp * Wp
    HWq = H * Wp                # output in padded-row-stride layout (cols j in [0, Wp))
    # pad + bf16 cast fuse into a single producer pass; the reshape is free.
    xpf = jnp.pad(x.astype(jnp.bfloat16),
                  ((0, 0), (0, 0), (p, p + 1), (p, p))).reshape(B, Cin, Lpad)
    w_taps = weight.transpose(2, 3, 0, 1).reshape(K * K, Cout, Cin)

    per_cin = 2 * Lpad * 2 + HWq * 2                     # dbl-buf bf16 input + tap slice
    fixed = Cout * HWq * (2 * out_b + 4 + 4)             # dbl-buf output + acc + f32 dot
    tcin = _choose_tcin(Cin, per_cin, fixed, budget)
    grid = (B, Cin // tcin)                              # Cin reduction axis last

    out_pad = pl.pallas_call(
        _make_kxk_kernel(K, Wp, HWq),
        out_shape=jax.ShapeDtypeStruct((B, Cout, HWq), x.dtype),
        grid_spec=pltpu.PrefetchScalarGridSpec(
            num_scalar_prefetch=0,
            grid=grid,
            in_specs=[
                pl.BlockSpec((1, tcin, Lpad), lambda b, c: (b, c, 0)),
                pl.BlockSpec((K * K, Cout, tcin), lambda b, c: (0, 0, c)),
                pl.BlockSpec((Cout, 1), lambda b, c: (0, 0)),
            ],
            out_specs=pl.BlockSpec((1, Cout, HWq), lambda b, c: (b, 0, 0)),
            scratch_shapes=[pltpu.VMEM((Cout, HWq), jnp.float32)],
        ),
        compiler_params=pltpu.CompilerParams(
            dimension_semantics=("parallel", "arbitrary"),
            vmem_limit_bytes=vmem_limit,
        ),
    )(xpf, w_taps, b_col)
    # TODO(synk): for very large feature maps also tile the pixel axis in the K>1
    # path (needs pl.Element halo offsets); whole-image blocks are fine for heads.
    return out_pad.reshape(B, Cout, H, Wp)[..., :W]


# ----------------------------- test ----------------------------------------- #

def _reference_conv(x, weight, bias, kernel_size):
    p = (kernel_size - 1) // 2
    out = jax.lax.conv_general_dilated(
        x, weight, window_strides=(1, 1),
        padding=((p, p), (p, p)),
        dimension_numbers=("NCHW", "OIHW", "NCHW"))
    return out + bias.reshape(1, -1, 1, 1)


if __name__ == "__main__":
    key = jax.random.PRNGKey(0)
    B, Cin, Cout, H, W = 2, 4, 8, 16, 16
    conv = jax.jit(my_conv2d, static_argnames=("kernel_size",))

    for K, tol in ((1, 2e-2), (3, 5e-2)):   # module default K=1; also exercise K=3 path
        kx, kw, kb = jax.random.split(jax.random.fold_in(key, K), 3)
        x = jax.random.normal(kx, (B, Cin, H, W), dtype=jnp.float32)
        bound = 1.0 / np.sqrt(Cin * K * K)  # PyTorch-style uniform init bound
        weight = jax.random.uniform(kw, (Cout, Cin, K, K), jnp.float32, -bound, bound)
        bias = jax.random.uniform(kb, (Cout,), jnp.float32, -bound, bound)

        out = jax.block_until_ready(conv(x, weight, bias, kernel_size=K))
        ref = _reference_conv(x, weight, bias, K)
        assert out.shape == (B, Cout, H, W)
        # bf16 operands (f32 accumulation) -> widened tolerance vs f32 reference.
        np.testing.assert_allclose(np.asarray(out), np.asarray(ref),
                                   rtol=tol, atol=tol)

    print("KERNEL_OK")
</pallas_src>

<mosaic_0001>
module attributes {stable_mosaic.version = 11 : i64} {
  func.func @_conv1x1_kernel(%arg0: i32, %arg1: i32, %arg2: memref<1x4x256xf32, #tpu.memory_space<vmem>>, %arg3: memref<8x4xf32, #tpu.memory_space<vmem>>, %arg4: memref<8x1xf32, #tpu.memory_space<vmem>>, %arg5: memref<1x8x256xf32, #tpu.memory_space<vmem>>) attributes {dimension_semantics = [#tpu.dimension_semantics<parallel>, #tpu.dimension_semantics<parallel>], iteration_bounds = array<i64: 2, 1>, scalar_prefetch = 0 : i64, scratch_operands = 0 : i64, tpu.core_type = #tpu.core_type<tc>, window_params = [{transform_indices = @transform_0, window_bounds = array<i64: 1, 4, 256>}, {pipeline_mode = #tpu.pipeline_mode<synchronous>, transform_indices = @transform_1, window_bounds = array<i64: 8, 4>}, {pipeline_mode = #tpu.pipeline_mode<synchronous>, transform_indices = @transform_2, window_bounds = array<i64: 8, 1>}, {transform_indices = @transform_3, window_bounds = array<i64: 1, 8, 256>}]} {
    %c0 = arith.constant 0 : index
    %c0_0 = arith.constant 0 : index
    %c0_1 = arith.constant 0 : index
    %0 = vector.load %arg2[%c0, %c0_0, %c0_1] : memref<1x4x256xf32, #tpu.memory_space<vmem>>, vector<1x4x256xf32>
    %1 = vector.shape_cast %0 : vector<1x4x256xf32> to vector<4x256xf32>
    %2 = arith.truncf %1 : vector<4x256xf32> to vector<4x256xbf16>
    %c0_2 = arith.constant 0 : index
    %c0_3 = arith.constant 0 : index
    %3 = vector.load %arg3[%c0_2, %c0_3] : memref<8x4xf32, #tpu.memory_space<vmem>>, vector<8x4xf32>
    %4 = arith.truncf %3 : vector<8x4xf32> to vector<8x4xbf16>
    %cst = arith.constant dense<0.000000e+00> : vector<8x256xf32>
    %5 = tpu.matmul %4, %2, %cst {dimension_numbers = #tpu.dot_dimension_numbers<[1], [0], [0], [1], [0, 0, 1, 1], [], []>} : vector<8x4xbf16>, vector<4x256xbf16>, vector<8x256xf32> -> vector<8x256xf32>
    %c0_4 = arith.constant 0 : index
    %c0_5 = arith.constant 0 : index
    %6 = vector.load %arg4[%c0_4, %c0_5] : memref<8x1xf32, #tpu.memory_space<vmem>>, vector<8x1xf32>
    %7 = vector.broadcast %6 : vector<8x1xf32> to vector<8x256xf32>
    %8 = arith.addf %5, %7 : vector<8x256xf32>
    %c0_6 = arith.constant 0 : index
    %c0_7 = arith.constant 0 : index
    %c0_8 = arith.constant 0 : index
    %9 = vector.load %arg5[%c0_6, %c0_7, %c0_8] : memref<1x8x256xf32, #tpu.memory_space<vmem>>, vector<1x8x256xf32>
    %10 = vector.shape_cast %9 : vector<1x8x256xf32> to vector<8x256xf32>
    %11 = vector.shape_cast %8 : vector<8x256xf32> to vector<1x8x256xf32>
    tpu.vector_store %arg5[%c0_6, %c0_7, %c0_8], %11 {strides = array<i32>} : memref<1x8x256xf32, #tpu.memory_space<vmem>>, vector<1x8x256xf32>,
    return
  }
  func.func @transform_0(%arg0: i32, %arg1: i32) -> (i32, i32, i32) {
    %c0_i32 = arith.constant 0 : i32
    %c0_i32_0 = arith.constant 0 : i32
    return %arg0, %c0_i32, %arg1 : i32, i32, i32
  }
  func.func @transform_1(%arg0: i32, %arg1: i32) -> (i32, i32) {
    %c0_i32 = arith.constant 0 : i32
    %c0_i32_0 = arith.constant 0 : i32
    %c0_i32_1 = arith.constant 0 : i32
    return %c0_i32, %c0_i32_0 : i32, i32
  }
  func.func @transform_2(%arg0: i32, %arg1: i32) -> (i32, i32) {
    %c0_i32 = arith.constant 0 : i32
    %c0_i32_0 = arith.constant 0 : i32
    %c0_i32_1 = arith.constant 0 : i32
    return %c0_i32, %c0_i32_0 : i32, i32
  }
  func.func @transform_3(%arg0: i32, %arg1: i32) -> (i32, i32, i32) {
    %c0_i32 = arith.constant 0 : i32
    %c0_i32_0 = arith.constant 0 : i32
    return %arg0, %c0_i32, %arg1 : i32, i32, i32
  }
}

</mosaic_0001>

<llo_original>
// kernel: my_conv2d.1
$region0: #{my_conv2d.1}
  #allocation0 [shape = 'u32[]', space=smem, size = 0x4, offset = 0x4, fixed_abs, tag = 'smem constant byte address 0x4 - core index']
  #allocation1 [shape = 'u32[144,128]{1,0:T(1,128)}', space=vmem, size = 0x12000, scoped, tag = 'internal scratch']
  %s0 = inlined_call_operand.vmem [shape: f32[2,4,256], index: 0, kind: input, shape index: {}]
  %s1 = inlined_call_operand.vmem [shape: f32[8,4], index: 1, kind: input, shape index: {}]
  %s2 = inlined_call_operand.vmem [shape: f32[8,1], index: 2, kind: input, shape index: {}]
  %s3 = inlined_call_operand.vmem [shape: f32[2,8,256], index: 3, kind: output, shape index: {}]
  %s4 = sld [smem:[#allocation0]]
  $region45: #{my_conv2d.1} parent=0
    _
  %s6 = ssub.s32 1, %s4
  %s7 = scalar_select 0, %s6, %s4
  loop: start=0, step=1, limit=4
  $region2: #{my_conv2d.1} parent=0 // loop_pre_header
    _
  $region3: #{my_conv2d.1} parent=0 // loop_header
    %s9 = sphi 0, %s13
    %p10 = scmp.ge.s32.totalorder %s9, 4
    %s16 = sphi 0, %s28
    %s17 = sphi 0, %s24
    %s18 = sphi 0, %s16
    %s19 = sphi 0, %s17
    %s20 = sphi 0, %s18
    %s21 = sphi 0, %s19
    %s33 = sphi 0, %s35
    %s36 = sphi 0, %s33
    %s37 = sphi 0, %s36
    %s53 = sphi 0, %s37
    %s57 = sphi 0, %s57
    %s59 = sphi 0, %s57
    %s60 = sphi 0, %s59
    %s74 = sphi 0, %s60
    %s78 = sphi 0, %s78
    %s80 = sphi 0, %s78
    %s81 = sphi 0, %s80
    %s95 = sphi 0, %s81
    %s103 = sphi 0, %s105
    %s106 = sphi 0, %s103
    %s107 = sphi 0, %s106
    %s123 = sphi 0, %s107
  $region4: #{my_conv2d.1} parent=0 // loop_header_branch
    %12 = sbr.rel (%p10) target = $region8
  $region5: #{my_conv2d.1} parent=0 // loop_body
    %s14 = ssub.s32 %s9, 1
    %s15 = ssub.s32 %s9, 2
    %s22 = sadd.s32 1, %s17
    %p23 = scmp.ge.s32.totalorder %s22, 1
    %s24 = scalar_select %p23, 0, %s22
    %s25 = sadd.s32 1, %s16
    %s26 = scalar_select %p23, %s25, %s16
    %p27 = scmp.ge.s32.totalorder %s26, 2
    %s28 = scalar_select %p27, 0, %s26
    %s29 = ssub.s32 %s16, %s28
    %s30 = ssub.s32 %s17, %s24
    %s31 = sor.u32 %s29, %s30
    %p32 = scmp.eq.s32.totalorder %s31, 0
    %s34 = sadd.s32 %s33, 1
    %s35 = scalar_select %p32, %s33, %s34
    %p38 = pneg %p32
    %p39 = scmp.eq.s32.totalorder %s9, 1
    %p40 = por %p38, %p39
    %p41 = scmp.ne.s32.totalorder %s33, %s36
    %p42 = scmp.eq.s32.totalorder %s9, 0
    %p43 = por %p41, %p42
    %p44 = scmp.ne.s32.totalorder %s33, %s36
    %p45 = scmp.eq.s32.totalorder %s14, 1
    %p46 = por %p44, %p45
    %p47 = scmp.ne.s32.totalorder %s36, %s37
    %p48 = scmp.eq.s32.totalorder %s14, 0
    %p49 = por %p47, %p48
    %p50 = scmp.ne.s32.totalorder %s36, %s37
    %p51 = scmp.eq.s32.totalorder %s15, 1
    %p52 = por %p50, %p51
    %p54 = scmp.ne.s32.totalorder %s37, %s53
    %p55 = scmp.eq.s32.totalorder %s15, 0
    %p56 = por %p54, %p55
    %s58 = sadd.s32 %s57, 1
    %p61 = scmp.eq.s32.totalorder %s9, 1
    %p62 = scmp.ne.s32.totalorder %s57, %s59
    %p63 = scmp.eq.s32.totalorder %s9, 0
    %p64 = por %p62, %p63
    %p65 = scmp.ne.s32.totalorder %s57, %s59
    %p66 = scmp.eq.s32.totalorder %s14, 1
    %p67 = por %p65, %p66
    %p68 = scmp.ne.s32.totalorder %s59, %s60
    %p69 = scmp.eq.s32.totalorder %s14, 0
    %p70 = por %p68, %p69
    %p71 = scmp.ne.s32.totalorder %s59, %s60
    %p72 = scmp.eq.s32.totalorder %s15, 1
    %p73 = por %p71, %p72
    %p75 = scmp.ne.s32.totalorder %s60, %s74
    %p76 = scmp.eq.s32.totalorder %s15, 0
    %p77 = por %p75, %p76
    %s79 = sadd.s32 %s78, 1
    %p82 = scmp.eq.s32.totalorder %s9, 1
    %p83 = scmp.ne.s32.totalorder %s78, %s80
    %p84 = scmp.eq.s32.totalorder %s9, 0
    %p85 = por %p83, %p84
    %p86 = scmp.ne.s32.totalorder %s78, %s80
    %p87 = scmp.eq.s32.totalorder %s14, 1
    %p88 = por %p86, %p87
    %p89 = scmp.ne.s32.totalorder %s80, %s81
    %p90 = scmp.eq.s32.totalorder %s14, 0
    %p91 = por %p89, %p90
    %p92 = scmp.ne.s32.totalorder %s80, %s81
    %p93 = scmp.eq.s32.totalorder %s15, 1
    %p94 = por %p92, %p93
    %p96 = scmp.ne.s32.totalorder %s81, %s95
    %p97 = scmp.eq.s32.totalorder %s15, 0
    %p98 = por %p96, %p97
    %s99 = ssub.s32 %s16, %s28
    %s100 = ssub.s32 %s17, %s24
    %s101 = sor.u32 %s99, %s100
    %p102 = scmp.eq.s32.totalorder %s101, 0
    %s104 = sadd.s32 %s103, 1
    %s105 = scalar_select %p102, %s103, %s104
    %p108 = pneg %p102
    %p109 = scmp.eq.s32.totalorder %s9, 1
    %p110 = por %p108, %p109
    %p111 = scmp.ne.s32.totalorder %s103, %s106
    %p112 = scmp.eq.s32.totalorder %s9, 0
    %p113 = por %p111, %p112
    %p114 = scmp.ne.s32.totalorder %s103, %s106
    %p115 = scmp.eq.s32.totalorder %s14, 1
    %p116 = por %p114, %p115
    %p117 = scmp.ne.s32.totalorder %s106, %s107
    %p118 = scmp.eq.s32.totalorder %s14, 0
    %p119 = por %p117, %p118
    %p120 = scmp.ne.s32.totalorder %s106, %s107
    %p121 = scmp.eq.s32.totalorder %s15, 1
    %p122 = por %p120, %p121
    %p124 = scmp.ne.s32.totalorder %s107, %s123
    %p125 = scmp.eq.s32.totalorder %s15, 0
    %p126 = por %p124, %p125
    %p127 = scmp.le.s32.totalorder 1, %s9
    %p128 = scmp.lt.s32.totalorder %s9, 3
    %p129 = pnand %p127, %p128
    %p130 = pneg %p129
    // Predicated region
    $region9: #{my_conv2d.1} parent=5 // pred_check
      _
    $region10: #{my_conv2d.1} parent=5 // pred_check_branch
      %132 = sbr.rel (%p129) target = $region12
    $region11: #{my_conv2d.1} parent=5 // pred_region
      %s133 = ssub.s32 %s9, 1
      // Predicated region
      $region13: #{my_conv2d.1} parent=11 // pred_check
        %p134 = pneg %p70
      $region14: #{my_conv2d.1} parent=11 // pred_check_branch
        %136 = sbr.rel (%p134) target = $region16
      $region15: #{my_conv2d.1} parent=11 // pred_region
        _
      $region16: #{my_conv2d.1} parent=11 // pred_fallthru
        _
      // Predicated region
      $region17: #{my_conv2d.1} parent=11 // pred_check
        %p137 = pneg %p91
      $region18: #{my_conv2d.1} parent=11 // pred_check_branch
        %139 = sbr.rel (%p137) target = $region20
      $region19: #{my_conv2d.1} parent=11 // pred_region
        _
      $region20: #{my_conv2d.1} parent=11 // pred_fallthru
        _
    $region12: #{my_conv2d.1} parent=5 // pred_fallthru
      _
    %p140 = scmp.lt.s32.totalorder %s9, 2
    // Predicated region
    $region21: #{my_conv2d.1} parent=5 // pred_check
      %p141 = pneg %p140
    $region22: #{my_conv2d.1} parent=5 // pred_check_branch
      %143 = sbr.rel (%p141) target = $region24
    $region23: #{my_conv2d.1} parent=5 // pred_region
      // Predicated region
      $region25: #{my_conv2d.1} parent=23 // pred_check
        %p144 = pneg %p43
      $region26: #{my_conv2d.1} parent=23 // pred_check_branch
        %146 = sbr.rel (%p144) target = $region28
      $region27: #{my_conv2d.1} parent=23 // pred_region
        %s147 = smul.u32 2, %s17
        %p148 = scmp.lt.s32.totalorder %s16, 1
        %s149 = scalar_select %p148, %s16, 1
        %p150 = scmp.lt.s32.totalorder %s147, 1
        %s151 = scalar_select %p150, %s147, 1
        %s152 = smul.addr %s149, 2
        %s153 = sadd.s32 %s151, %s152
        %s154 = smul.addr %s153, 4
        %s155 = scalar_lea.vmem %s0, %s154
        %s156 = smul.u32 2, %s17
      $region28: #{my_conv2d.1} parent=23 // pred_fallthru
        _
    $region24: #{my_conv2d.1} parent=5 // pred_fallthru
      _
    %p157 = scmp.le.s32.totalorder 1, %s9
    %p158 = scmp.lt.s32.totalorder %s9, 3
    %p159 = pnand %p157, %p158
    %p160 = pneg %p159
    // Predicated region
    $region29: #{my_conv2d.1} parent=5 // pred_check
      _
    $region30: #{my_conv2d.1} parent=5 // pred_check_branch
      %162 = sbr.rel (%p159) target = $region32
    $region31: #{my_conv2d.1} parent=5 // pred_region
      %s163 = ssub.s32 %s9, 1
      %s164 = smul.u32 2, %s19
      %p165 = scmp.lt.s32.totalorder %s18, 1
      %s166 = scalar_select %p165, %s18, 1
      %p167 = scmp.lt.s32.totalorder %s164, 1
      %s168 = scalar_select %p167, %s164, 1
      %s169 = smul.addr %s166, 2
      %s170 = sadd.s32 %s168, %s169
      %s171 = smul.addr %s170, 4
      %s172 = scalar_lea.vmem %s0, %s171
      %p173 = pneg %p49
      %p174 = pneg %p46
      %p175 = pneg %p70
      %p176 = pneg %p67
      %p177 = pneg %p91
      %p178 = pneg %p88
      %p179 = pneg %p119
      %p180 = pneg %p116
      %s181 = smul.u32 2, %s19
      %p182 = scmp.lt.s32.totalorder %s18, 1
      %s183 = scalar_select %p182, %s18, 1
      %p184 = scmp.lt.s32.totalorder %s181, 1
      %s185 = scalar_select %p184, %s181, 1
      %s186 = smul.addr %s183, 2
      %s187 = sadd.s32 %s185, %s186
      %s188 = smul.addr %s187, 8
      %s189 = scalar_lea.vmem %s3, %s188
      %s190 = smul.u32 2, %s19
      %p191 = scmp.lt.s32.totalorder %s18, 1
      %s192 = scalar_select %p191, %s18, 1
      %p193 = scmp.lt.s32.totalorder %s190, 1
      %s194 = scalar_select %p193, %s190, 1
      %s195 = smul.addr %s192, 2
      %s196 = sadd.s32 %s194, %s195
      %s197 = smul.addr %s196, 4
      %s198 = scalar_lea.vmem %s0, %s197
      %s199 = smul.u32 2, %s19
      %s200 = smul.u32 2, %s19
      %p201 = scmp.lt.s32.totalorder %s18, 1
      %s202 = scalar_select %p201, %s18, 1
      %p203 = scmp.lt.s32.totalorder %s200, 1
      %s204 = scalar_select %p203, %s200, 1
      %s205 = smul.addr %s202, 2
      %s206 = sadd.s32 %s204, %s205
      %s207 = smul.addr %s206, 8
      %s208 = scalar_lea.vmem %s3, %s207
      %s209 = smul.u32 2, %s19
      %v211 = vld [vmem:[%s198] sm:$0xff]
      %v213 = vcombine.high %v211, %v211
      %v215 = vpack.c.bf16 %v211, %v211
      %v216 = vpack.c.bf16 %v213, %v213
      %v217 = vld [vmem:[%s1] sm:$0xff]
      %v218 = vpack.c.bf16 %v217, %v217
      %v219 = vld [vmem:[%s2] sm:$0xff]
      %221 = vset.pattern.permute.xlu0 0
      %222 = vperm.xlu0 %221, %v219
      %v223 = vpop.permute.xlu0 %222
      %vm225 = vcmask 31744
      %v227 = vsel %vm225, %v218, 0
      %vm229 = vcmask 1041408
      %v231 = vsel %vm229, %v215, 0
      %v234 = vsel %vm229, %v216, 0
      %236 = vmatprep.subr.bf16.mxu0 0
      %237 = vmatpush1.bf16.msra.mxu0 0
      %238 = vmatprep.subr.bf16.mxu0 0
      %239 = vmatpush1.bf16.msra.mxu0 0
      %240 = vmatprep.subr.bf16.mxu0 0
      %241 = vmatpush1.bf16.msra.mxu0 0
      %242 = vmatprep.subr.bf16.mxu0 0
      %243 = vmatpush1.bf16.msra.mxu0 0
      %244 = vmatprep.subr.bf16.mxu0 0
      %245 = vmatpush1.bf16.msra.mxu0 0
      %246 = vmatprep.subr.bf16.mxu0 0
      %247 = vmatpush1.bf16.msra.mxu0 0
      %248 = vmatprep.subr.bf16.mxu0 0
      %249 = vmatpush1.bf16.msra.mxu0 0
      %250 = vmatprep.subr.bf16.mxu0 %v234
      %251 = vmatpush1.bf16.msra.mxu0 %v231
      %252 = vmatprep.subr.bf16.mxu0 0
      %253 = vmatpush2.bf16.msra.mxu0 0
      %254 = vmatprep.subr.bf16.mxu0 0
      %255 = vmatpush2.bf16.msra.mxu0 0
      %256 = vmatprep.subr.bf16.mxu0 0
      %257 = vmatpush2.bf16.msra.mxu0 0
      %258 = vmatprep.subr.bf16.mxu0 0
      %259 = vmatpush2.bf16.msra.mxu0 0
      %260 = vmatprep.subr.bf16.mxu0 0
      %261 = vmatpush2.bf16.msra.mxu0 0
      %262 = vmatprep.subr.bf16.mxu0 0
      %263 = vmatpush2.bf16.msra.mxu0 0
      %264 = vmatprep.subr.bf16.mxu0 0
      %265 = vmatpush2.bf16.msra.mxu0 0
      %266 = vmatprep.subr.bf16.mxu0 0
      %267 = vmatpush2.bf16.msra.mxu0 0
      %268 = vmatprep.mubr.bf16.mxu0 0
      %269 = vmatmul.mubr.bf16.gmra.mxu0 %v227
      %v270 = vpop.f32.mrf.mxu0
      %v271 = vadd.f32 %v223, %v270
      %v272 = vpop.f32.mrf.mxu0
      %v273 = vadd.f32 %v223, %v272
      %v274 = vpop.f32.mrf.mxu0
      %v275 = vpop.f32.mrf.mxu0
      %276 = vdwg.mxu0
      %277 = vst [vmem:[%s208] sm:$0xff] %v271
      %278 = vst [vmem:[%s208 + $0x8] sm:$0xff] %v273
      %s279 = smul.u32 2, %s19
      %p280 = scmp.lt.s32.totalorder %s18, 1
      %s281 = scalar_select %p280, %s18, 1
      %p282 = scmp.lt.s32.totalorder %s279, 1
      %s283 = scalar_select %p282, %s279, 1
      %s284 = smul.addr %s281, 2
      %s285 = sadd.s32 %s283, %s284
      %s286 = smul.addr %s285, 8
      %s287 = scalar_lea.vmem %s3, %s286
      // Predicated region
      $region33: #{my_conv2d.1} parent=31 // pred_check
        %p288 = pneg %p116
      $region34: #{my_conv2d.1} parent=31 // pred_check_branch
        %290 = sbr.rel (%p288) target = $region36
      $region35: #{my_conv2d.1} parent=31 // pred_region
        %s291 = smul.u32 2, %s19
      $region36: #{my_conv2d.1} parent=31 // pred_fallthru
        _
    $region32: #{my_conv2d.1} parent=5 // pred_fallthru
      _
    %p292 = scmp.le.s32.totalorder 2, %s9
    // Predicated region
    $region37: #{my_conv2d.1} parent=5 // pred_check
      %p293 = pneg %p292
    $region38: #{my_conv2d.1} parent=5 // pred_check_branch
      %295 = sbr.rel (%p293) target = $region40
    $region39: #{my_conv2d.1} parent=5 // pred_region
      %s296 = ssub.s32 %s9, 2
      // Predicated region
      $region41: #{my_conv2d.1} parent=39 // pred_check
        %p297 = pneg %p122
      $region42: #{my_conv2d.1} parent=39 // pred_check_branch
        %299 = sbr.rel (%p297) target = $region44
      $region43: #{my_conv2d.1} parent=39 // pred_region
        %s300 = smul.u32 2, %s21
        %p301 = scmp.lt.s32.totalorder %s20, 1
        %s302 = scalar_select %p301, %s20, 1
        %p303 = scmp.lt.s32.totalorder %s300, 1
        %s304 = scalar_select %p303, %s300, 1
        %s305 = smul.addr %s302, 2
        %s306 = sadd.s32 %s304, %s305
        %s307 = smul.addr %s306, 8
        %s308 = scalar_lea.vmem %s3, %s307
      $region44: #{my_conv2d.1} parent=39 // pred_fallthru
        _
    $region40: #{my_conv2d.1} parent=5 // pred_fallthru
      _
  $region6: #{my_conv2d.1} parent=0 // loop_footer
    %s13 = sadd.s32 1, %s9
  $region7: #{my_conv2d.1} parent=0 // loop_footer_branch
    %8 = sbr.rel target = $region3
  $region8: #{my_conv2d.1} parent=0 // loop_exit
    _

</llo_original>
